<compile_context>
chip_gen: v7x
topology: tpu7x:2x2x1
jax: 0.10.0
libtpu: 0.0.40
codegen_flags: <defaults>
</compile_context>

<pallas_src>
import functools

import jax
import jax.numpy as jnp
from jax.experimental import pallas as pl
from jax.experimental.pallas import tpu as pltpu


def _charcnn_kernel(ids_ref, emb_ref, w_ref, b_ref, tmax_ref, o_ref, *,
                    BB, L_pad, k_max):
    """Fused embedding + packed conv + global max-pool + bias for one batch block.

    ids_ref : (BB*L_pad, 1) int32  flattened, padded char ids (-1 => zero row)
    emb_ref : (V, D)        f32    embedding table
    w_ref   : (k_max, D, C) f32    packed conv weights (taps >= k_f zeroed)
    b_ref   : (1, C)        f32    packed conv bias
    tmax_ref: (1, C)        int32  valid conv length T_f per output column
    o_ref   : (BB, C)       f32    max-pooled conv outputs
    """
    V = emb_ref.shape[0]
    C = w_ref.shape[2]
    N = BB * L_pad            # flattened (batch-row, padded-position) count
    T = L_pad - k_max + 1     # == L - k_min + 1: widest valid conv length
    M = N - k_max + 1         # conv rows over the flattened layout

    # --- Embedding lookup as a one-hot MXU matmul (no gather, no HBM x_embed).
    ids = ids_ref[...]                                            # (N, 1)
    lane = jax.lax.broadcasted_iota(jnp.int32, (N, V), 1)
    onehot = (lane == ids).astype(jnp.float32)                    # (N, V)
    x = jnp.dot(onehot, emb_ref[...],
                preferred_element_type=jnp.float32)               # (N, D)

    # --- Packed conv: k_max shifted (M, D) @ (D, C) matmuls, batch folded
    # into M.  Rows that straddle a batch-row boundary or exceed a filter's
    # valid length are masked out before the max below.
    acc = jnp.zeros((M, C), jnp.float32)
    for i in range(k_max):                                        # static unroll
        acc = acc + jnp.dot(x[i:i + M, :], w_ref[i],
                            preferred_element_type=jnp.float32)

    # --- Per-filter validity mask (shorter filters have more valid positions).
    t_idx = jax.lax.broadcasted_iota(jnp.int32, (T, C), 0)
    valid = t_idx < tmax_ref[...]                                 # (T, C)
    neg_inf = jnp.float32(-jnp.inf)

    # --- Global max-pool per batch row (tiny static loop, NO stores inside),
    # then one lane-dense (BB, C) store.  Bias added after the max.
    rows = []
    for bi in range(BB):
        window = acc[bi * L_pad: bi * L_pad + T, :]               # (T, C)
        window = jnp.where(valid, window, neg_inf)
        rows.append(jnp.max(window, axis=0, keepdims=True))       # (1, C)
    pooled = jnp.concatenate(rows, axis=0)                        # (BB, C)
    o_ref[...] = pooled + b_ref[...]


def char_cnn_forward(ids, emb_weight, conv_weights, conv_biases, *,
                     batch_block=8):
    """Full CharCNN forward in a single fused pallas_call.

    conv_weights[f] has shape (k_f, D, C_f) with w[i, d, c] == W_torch[c, 0, i, d];
    conv_biases[f] has shape (1, C_f) (or (C_f,)).
    """
    B, L = ids.shape
    V, D = emb_weight.shape
    ks = [int(w.shape[0]) for w in conv_weights]
    cs = [int(w.shape[2]) for w in conv_weights]
    k_max, k_min = max(ks), min(ks)
    assert L >= k_max, "char sequence shorter than the largest conv filter"
    C_total = sum(cs)
    L_pad = L + (k_max - k_min)          # pad so every filter's valid range fits

    # Pad the batch to a multiple of the batch block (sublane-aligned blocks);
    # pad positions/rows use id -1, which one-hots to an all-zero embedding row.
    BB = batch_block
    B_pad = ((B + BB - 1) // BB) * BB
    ids_pad = jnp.full((B_pad, L_pad), -1, jnp.int32)
    ids_pad = ids_pad.at[:B, :L].set(ids.astype(jnp.int32))
    ids_flat = ids_pad.reshape(B_pad * L_pad, 1)

    # Pack all filters into one weight slab / bias row / valid-length row.
    w_slab = jnp.zeros((k_max, D, C_total), jnp.float32)
    tmax = jnp.zeros((1, C_total), jnp.int32)
    off = 0
    for w, k_f, c_f in zip(conv_weights, ks, cs):
        w_slab = w_slab.at[:k_f, :, off:off + c_f].set(w.astype(jnp.float32))
        tmax = tmax.at[:, off:off + c_f].set(L - k_f + 1)
        off += c_f
    b_packed = jnp.concatenate(
        [jnp.reshape(b, (1, -1)).astype(jnp.float32) for b in conv_biases],
        axis=1)                                                   # (1, C_total)

    kernel = functools.partial(_charcnn_kernel, BB=BB, L_pad=L_pad, k_max=k_max)
    out = pl.pallas_call(
        kernel,
        out_shape=jax.ShapeDtypeStruct((B_pad, C_total), jnp.float32),
        grid=(B_pad // BB,),
        in_specs=[
            pl.BlockSpec((BB * L_pad, 1), lambda g: (g, 0)),          # ids
            pl.BlockSpec((V, D), lambda g: (0, 0)),                   # embedding
            pl.BlockSpec((k_max, D, C_total), lambda g: (0, 0, 0)),   # weights
            pl.BlockSpec((1, C_total), lambda g: (0, 0)),             # bias
            pl.BlockSpec((1, C_total), lambda g: (0, 0)),             # tmax
        ],
        out_specs=pl.BlockSpec((BB, C_total), lambda g: (g, 0)),
        compiler_params=pltpu.CompilerParams(
            dimension_semantics=("parallel",)),
    )(ids_flat, emb_weight.astype(jnp.float32), w_slab, b_packed, tmax)
    return out[:B]


def char_cnn_reference(ids, emb_weight, conv_weights, conv_biases):
    """Pure-jnp reference with identical semantics (for correctness check)."""
    x = jnp.take(emb_weight, ids, axis=0).astype(jnp.float32)        # (B, L, D)
    B, L, D = x.shape
    outs = []
    for w, b in zip(conv_weights, conv_biases):
        k, _, C = w.shape
        T = L - k + 1
        acc = jnp.zeros((B, T, C), jnp.float32)
        for i in range(k):
            acc = acc + jnp.einsum('btd,dc->btc', x[:, i:i + T, :], w[i],
                                   precision=jax.lax.Precision.HIGHEST)
        acc = acc + jnp.reshape(b, (1, 1, -1))                       # bias
        outs.append(jnp.max(acc, axis=1))                            # (B, C)
    return jnp.concatenate(outs, axis=1)


if __name__ == "__main__":
    # Small shapes consistent with the module.
    vocab_size = 20
    dimension = 32                   # embedding_dim D (== conv kernel width)
    filters = [(2, 16), (3, 16)]     # (kernel_height, num_filters)
    padding_extra = 2                # Embedding(..., padding=2)
    B, L = 2, 8                      # batch, char-sequence length

    key = jax.random.PRNGKey(0)
    k_ids, k_emb, *k_convs = jax.random.split(key, 2 + 2 * len(filters))

    # Token ids (padding_idx = 0 allowed).
    ids = jax.random.randint(k_ids, (B, L), 0, vocab_size + padding_extra,
                             dtype=jnp.int32)

    # Embedding weight: xavier-normal-ish, row 0 zeroed (padding_idx=0).
    V = vocab_size + padding_extra
    emb_std = (2.0 / (V + dimension)) ** 0.5
    emb_weight = emb_std * jax.random.normal(k_emb, (V, dimension),
                                             dtype=jnp.float32)
    emb_weight = emb_weight.at[0].set(0.0)

    # Conv weights/biases: deterministic uniform init (PyTorch-default style).
    conv_weights, conv_biases = [], []
    for idx, (kf, cf) in enumerate(filters):
        kw, kb = k_convs[2 * idx], k_convs[2 * idx + 1]
        fan_in = kf * dimension
        bound = 1.0 / (fan_in ** 0.5)
        w = jax.random.uniform(kw, (kf, dimension, cf), jnp.float32,
                               minval=-bound, maxval=bound)
        b = jax.random.uniform(kb, (1, cf), jnp.float32,
                               minval=-bound, maxval=bound)
        conv_weights.append(w)
        conv_biases.append(b)

    out = char_cnn_forward(ids, emb_weight, conv_weights, conv_biases)
    out = jax.block_until_ready(out)

    ref = char_cnn_reference(ids, emb_weight, conv_weights, conv_biases)
    assert out.shape == (B, sum(c for _, c in filters)), out.shape
    assert jnp.allclose(out, ref, atol=1e-5, rtol=1e-5), "mismatch vs reference"

    print("KERNEL_OK")
</pallas_src>

<mosaic_0001>
module attributes {stable_mosaic.version = 11 : i64} {
  func.func @_charcnn_kernel(%arg0: i32, %arg1: memref<72x1xi32, #tpu.memory_space<vmem>>, %arg2: memref<22x32xf32, #tpu.memory_space<vmem>>, %arg3: memref<3x32x32xf32, #tpu.memory_space<vmem>>, %arg4: memref<1x32xf32, #tpu.memory_space<vmem>>, %arg5: memref<1x32xi32, #tpu.memory_space<vmem>>, %arg6: memref<8x32xf32, #tpu.memory_space<vmem>>) attributes {dimension_semantics = [#tpu.dimension_semantics<parallel>], iteration_bounds = array<i64: 1>, scalar_prefetch = 0 : i64, scratch_operands = 0 : i64, tpu.core_type = #tpu.core_type<tc>, window_params = [{transform_indices = @transform_0, window_bounds = array<i64: 72, 1>}, {pipeline_mode = #tpu.pipeline_mode<synchronous>, transform_indices = @transform_1, window_bounds = array<i64: 22, 32>}, {pipeline_mode = #tpu.pipeline_mode<synchronous>, transform_indices = @transform_2, window_bounds = array<i64: 3, 32, 32>}, {pipeline_mode = #tpu.pipeline_mode<synchronous>, transform_indices = @transform_3, window_bounds = array<i64: 1, 32>}, {pipeline_mode = #tpu.pipeline_mode<synchronous>, transform_indices = @transform_4, window_bounds = array<i64: 1, 32>}, {transform_indices = @transform_5, window_bounds = array<i64: 8, 32>}]} {
    %c0 = arith.constant 0 : index
    %c0_0 = arith.constant 0 : index
    %0 = vector.load %arg1[%c0, %c0_0] : memref<72x1xi32, #tpu.memory_space<vmem>>, vector<72x1xi32>
    %1 = tpu.iota {dimensions = array<i32: 1>} : vector<72x22xi32>
    %2 = vector.broadcast %0 : vector<72x1xi32> to vector<72x22xi32>
    %3 = arith.cmpi eq, %1, %2 : vector<72x22xi32>
    %4 = arith.extui %3 : vector<72x22xi1> to vector<72x22xi32>
    %5 = arith.sitofp %4 : vector<72x22xi32> to vector<72x22xf32>
    %c0_1 = arith.constant 0 : index
    %c0_2 = arith.constant 0 : index
    %6 = vector.load %arg2[%c0_1, %c0_2] : memref<22x32xf32, #tpu.memory_space<vmem>>, vector<22x32xf32>
    %cst = arith.constant dense<0.000000e+00> : vector<72x32xf32>
    %7 = tpu.matmul %5, %6, %cst {dimension_numbers = #tpu.dot_dimension_numbers<[1], [0], [0], [1], [0, 0, 1, 1], [], []>} : vector<72x22xf32>, vector<22x32xf32>, vector<72x32xf32> -> vector<72x32xf32>
    %cst_3 = arith.constant 0.000000e+00 : f32
    %8 = vector.broadcast %cst_3 : f32 to vector<70x32xf32>
    %9 = vector.extract_strided_slice %7 {offsets = [0, 0], sizes = [70, 32], strides = [1, 1]} : vector<72x32xf32> to vector<70x32xf32>
    %c0_4 = arith.constant 0 : index
    %c0_5 = arith.constant 0 : index
    %c0_6 = arith.constant 0 : index
    %10 = vector.load %arg3[%c0_4, %c0_5, %c0_6] : memref<3x32x32xf32, #tpu.memory_space<vmem>>, vector<1x32x32xf32>
    %11 = vector.shape_cast %10 : vector<1x32x32xf32> to vector<32x32xf32>
    %cst_7 = arith.constant dense<0.000000e+00> : vector<70x32xf32>
    %12 = tpu.matmul %9, %11, %cst_7 {dimension_numbers = #tpu.dot_dimension_numbers<[1], [0], [0], [1], [0, 0, 1, 1], [], []>} : vector<70x32xf32>, vector<32x32xf32>, vector<70x32xf32> -> vector<70x32xf32>
    %13 = arith.addf %8, %12 : vector<70x32xf32>
    %14 = vector.extract_strided_slice %7 {offsets = [1, 0], sizes = [70, 32], strides = [1, 1]} : vector<72x32xf32> to vector<70x32xf32>
    %c1 = arith.constant 1 : index
    %c0_8 = arith.constant 0 : index
    %c0_9 = arith.constant 0 : index
    %15 = vector.load %arg3[%c1, %c0_8, %c0_9] : memref<3x32x32xf32, #tpu.memory_space<vmem>>, vector<1x32x32xf32>
    %16 = vector.shape_cast %15 : vector<1x32x32xf32> to vector<32x32xf32>
    %cst_10 = arith.constant dense<0.000000e+00> : vector<70x32xf32>
    %17 = tpu.matmul %14, %16, %cst_10 {dimension_numbers = #tpu.dot_dimension_numbers<[1], [0], [0], [1], [0, 0, 1, 1], [], []>} : vector<70x32xf32>, vector<32x32xf32>, vector<70x32xf32> -> vector<70x32xf32>
    %18 = arith.addf %13, %17 : vector<70x32xf32>
    %19 = vector.extract_strided_slice %7 {offsets = [2, 0], sizes = [70, 32], strides = [1, 1]} : vector<72x32xf32> to vector<70x32xf32>
    %c2 = arith.constant 2 : index
    %c0_11 = arith.constant 0 : index
    %c0_12 = arith.constant 0 : index
    %20 = vector.load %arg3[%c2, %c0_11, %c0_12] : memref<3x32x32xf32, #tpu.memory_space<vmem>>, vector<1x32x32xf32>
    %21 = vector.shape_cast %20 : vector<1x32x32xf32> to vector<32x32xf32>
    %cst_13 = arith.constant dense<0.000000e+00> : vector<70x32xf32>
    %22 = tpu.matmul %19, %21, %cst_13 {dimension_numbers = #tpu.dot_dimension_numbers<[1], [0], [0], [1], [0, 0, 1, 1], [], []>} : vector<70x32xf32>, vector<32x32xf32>, vector<70x32xf32> -> vector<70x32xf32>
    %23 = arith.addf %18, %22 : vector<70x32xf32>
    %24 = tpu.iota {dimensions = array<i32: 0>} : vector<7x32xi32>
    %c0_14 = arith.constant 0 : index
    %c0_15 = arith.constant 0 : index
    %25 = vector.load %arg5[%c0_14, %c0_15] : memref<1x32xi32, #tpu.memory_space<vmem>>, vector<1x32xi32>
    %26 = vector.broadcast %25 : vector<1x32xi32> to vector<7x32xi32>
    %27 = arith.cmpi slt, %24, %26 : vector<7x32xi32>
    %28 = vector.extract_strided_slice %23 {offsets = [0, 0], sizes = [7, 32], strides = [1, 1]} : vector<70x32xf32> to vector<7x32xf32>
    %cst_16 = arith.constant 0xFF800000 : f32
    %29 = vector.broadcast %cst_16 : f32 to vector<7x32xf32>
    %30 = arith.select %27, %28, %29 : vector<7x32xi1>, vector<7x32xf32>
    %cst_17 = arith.constant dense<0xFF800000> : vector<32xf32>
    %31 = vector.multi_reduction <maximumf>, %30, %cst_17 [0] : vector<7x32xf32> to vector<32xf32>
    %32 = vector.shape_cast %31 : vector<32xf32> to vector<1x32xf32>
    %33 = vector.extract_strided_slice %23 {offsets = [9, 0], sizes = [7, 32], strides = [1, 1]} : vector<70x32xf32> to vector<7x32xf32>
    %cst_18 = arith.constant 0xFF800000 : f32
    %34 = vector.broadcast %cst_18 : f32 to vector<7x32xf32>
    %35 = arith.select %27, %33, %34 : vector<7x32xi1>, vector<7x32xf32>
    %cst_19 = arith.constant dense<0xFF800000> : vector<32xf32>
    %36 = vector.multi_reduction <maximumf>, %35, %cst_19 [0] : vector<7x32xf32> to vector<32xf32>
    %37 = vector.shape_cast %36 : vector<32xf32> to vector<1x32xf32>
    %38 = vector.extract_strided_slice %23 {offsets = [18, 0], sizes = [7, 32], strides = [1, 1]} : vector<70x32xf32> to vector<7x32xf32>
    %cst_20 = arith.constant 0xFF800000 : f32
    %39 = vector.broadcast %cst_20 : f32 to vector<7x32xf32>
    %40 = arith.select %27, %38, %39 : vector<7x32xi1>, vector<7x32xf32>
    %cst_21 = arith.constant dense<0xFF800000> : vector<32xf32>
    %41 = vector.multi_reduction <maximumf>, %40, %cst_21 [0] : vector<7x32xf32> to vector<32xf32>
    %42 = vector.shape_cast %41 : vector<32xf32> to vector<1x32xf32>
    %43 = vector.extract_strided_slice %23 {offsets = [27, 0], sizes = [7, 32], strides = [1, 1]} : vector<70x32xf32> to vector<7x32xf32>
    %cst_22 = arith.constant 0xFF800000 : f32
    %44 = vector.broadcast %cst_22 : f32 to vector<7x32xf32>
    %45 = arith.select %27, %43, %44 : vector<7x32xi1>, vector<7x32xf32>
    %cst_23 = arith.constant dense<0xFF800000> : vector<32xf32>
    %46 = vector.multi_reduction <maximumf>, %45, %cst_23 [0] : vector<7x32xf32> to vector<32xf32>
    %47 = vector.shape_cast %46 : vector<32xf32> to vector<1x32xf32>
    %48 = vector.extract_strided_slice %23 {offsets = [36, 0], sizes = [7, 32], strides = [1, 1]} : vector<70x32xf32> to vector<7x32xf32>
    %cst_24 = arith.constant 0xFF800000 : f32
    %49 = vector.broadcast %cst_24 : f32 to vector<7x32xf32>
    %50 = arith.select %27, %48, %49 : vector<7x32xi1>, vector<7x32xf32>
    %cst_25 = arith.constant dense<0xFF800000> : vector<32xf32>
    %51 = vector.multi_reduction <maximumf>, %50, %cst_25 [0] : vector<7x32xf32> to vector<32xf32>
    %52 = vector.shape_cast %51 : vector<32xf32> to vector<1x32xf32>
    %53 = vector.extract_strided_slice %23 {offsets = [45, 0], sizes = [7, 32], strides = [1, 1]} : vector<70x32xf32> to vector<7x32xf32>
    %cst_26 = arith.constant 0xFF800000 : f32
    %54 = vector.broadcast %cst_26 : f32 to vector<7x32xf32>
    %55 = arith.select %27, %53, %54 : vector<7x32xi1>, vector<7x32xf32>
    %cst_27 = arith.constant dense<0xFF800000> : vector<32xf32>
    %56 = vector.multi_reduction <maximumf>, %55, %cst_27 [0] : vector<7x32xf32> to vector<32xf32>
    %57 = vector.shape_cast %56 : vector<32xf32> to vector<1x32xf32>
    %58 = vector.extract_strided_slice %23 {offsets = [54, 0], sizes = [7, 32], strides = [1, 1]} : vector<70x32xf32> to vector<7x32xf32>
    %cst_28 = arith.constant 0xFF800000 : f32
    %59 = vector.broadcast %cst_28 : f32 to vector<7x32xf32>
    %60 = arith.select %27, %58, %59 : vector<7x32xi1>, vector<7x32xf32>
    %cst_29 = arith.constant dense<0xFF800000> : vector<32xf32>
    %61 = vector.multi_reduction <maximumf>, %60, %cst_29 [0] : vector<7x32xf32> to vector<32xf32>
    %62 = vector.shape_cast %61 : vector<32xf32> to vector<1x32xf32>
    %63 = vector.extract_strided_slice %23 {offsets = [63, 0], sizes = [7, 32], strides = [1, 1]} : vector<70x32xf32> to vector<7x32xf32>
    %cst_30 = arith.constant 0xFF800000 : f32
    %64 = vector.broadcast %cst_30 : f32 to vector<7x32xf32>
    %65 = arith.select %27, %63, %64 : vector<7x32xi1>, vector<7x32xf32>
    %cst_31 = arith.constant dense<0xFF800000> : vector<32xf32>
    %66 = vector.multi_reduction <maximumf>, %65, %cst_31 [0] : vector<7x32xf32> to vector<32xf32>
    %67 = vector.shape_cast %66 : vector<32xf32> to vector<1x32xf32>
    %68 = tpu.concatenate %32, %37, %42, %47, %52, %57, %62, %67 in 0 : vector<1x32xf32>, vector<1x32xf32>, vector<1x32xf32>, vector<1x32xf32>, vector<1x32xf32>, vector<1x32xf32>, vector<1x32xf32>, vector<1x32xf32> -> vector<8x32xf32>
    %c0_32 = arith.constant 0 : index
    %c0_33 = arith.constant 0 : index
    %69 = vector.load %arg4[%c0_32, %c0_33] : memref<1x32xf32, #tpu.memory_space<vmem>>, vector<1x32xf32>
    %70 = vector.broadcast %69 : vector<1x32xf32> to vector<8x32xf32>
    %71 = arith.addf %68, %70 : vector<8x32xf32>
    %c0_34 = arith.constant 0 : index
    %c0_35 = arith.constant 0 : index
    %72 = vector.load %arg6[%c0_34, %c0_35] : memref<8x32xf32, #tpu.memory_space<vmem>>, vector<8x32xf32>
    tpu.vector_store %arg6[%c0_34, %c0_35], %71 {strides = array<i32>} : memref<8x32xf32, #tpu.memory_space<vmem>>, vector<8x32xf32>,
    return
  }
  func.func @transform_0(%arg0: i32) -> (i32, i32) {
    %c0_i32 = arith.constant 0 : i32
    %c0_i32_0 = arith.constant 0 : i32
    return %arg0, %c0_i32 : i32, i32
  }
  func.func @transform_1(%arg0: i32) -> (i32, i32) {
    %c0_i32 = arith.constant 0 : i32
    %c0_i32_0 = arith.constant 0 : i32
    %c0_i32_1 = arith.constant 0 : i32
    return %c0_i32, %c0_i32_0 : i32, i32
  }
  func.func @transform_2(%arg0: i32) -> (i32, i32, i32) {
    %c0_i32 = arith.constant 0 : i32
    %c0_i32_0 = arith.constant 0 : i32
    %c0_i32_1 = arith.constant 0 : i32
    %c0_i32_2 = arith.constant 0 : i32
    return %c0_i32, %c0_i32_0, %c0_i32_1 : i32, i32, i32
  }
  func.func @transform_3(%arg0: i32) -> (i32, i32) {
    %c0_i32 = arith.constant 0 : i32
    %c0_i32_0 = arith.constant 0 : i32
    %c0_i32_1 = arith.constant 0 : i32
    return %c0_i32, %c0_i32_0 : i32, i32
  }
  func.func @transform_4(%arg0: i32) -> (i32, i32) {
    %c0_i32 = arith.constant 0 : i32
    %c0_i32_0 = arith.constant 0 : i32
    %c0_i32_1 = arith.constant 0 : i32
    return %c0_i32, %c0_i32_0 : i32, i32
  }
  func.func @transform_5(%arg0: i32) -> (i32, i32) {
    %c0_i32 = arith.constant 0 : i32
    %c0_i32_0 = arith.constant 0 : i32
    return %arg0, %c0_i32 : i32, i32
  }
}

</mosaic_0001>

<llo_original>
// kernel: tpu_custom_call.1
$region0: #{tpu_custom_call.1}
  #allocation0 [shape = 'u32[]', space=smem, size = 0x4, offset = 0x4, fixed_abs, tag = 'smem constant byte address 0x4 - core index']
  #allocation1 [shape = 'u32[144,128]{1,0:T(1,128)}', space=vmem, size = 0x12000, scoped, tag = 'internal scratch']
  %s0 = inlined_call_operand.vmem [shape: s32[72,1], index: 0, kind: input, shape index: {}]
  %s1 = inlined_call_operand.vmem [shape: f32[22,32], index: 1, kind: input, shape index: {}]
  %s2 = inlined_call_operand.hbm [shape: f32[3,32,32], index: 2, kind: input, shape index: {}]
  %s3 = inlined_call_operand.vmem [shape: f32[1,32], index: 3, kind: input, shape index: {}]
  %s4 = inlined_call_operand.vmem [shape: s32[1,32], index: 4, kind: input, shape index: {}]
  %s5 = inlined_call_operand.hbm [shape: f32[8,32], index: 5, kind: output, shape index: {}]
  %s6 = sld [smem:[#allocation0]]
  $region34: #{tpu_custom_call.1} parent=0
    _
  %s8 = ssub.s32 1, %s6
  %s9 = scalar_select 0, %s8, %s6
  $region1: #{tpu_custom_call.1} parent=0
    #allocation2 [shape = 'u8[49152]{0}', space=vmem, size = 0xc000, scoped, tag = 'input window, operand 2, single buffered']
    #allocation3 [shape = 's32[1]{0}', space=sflag, size = 0x4, scoped, tag = 'scoped memory for tpu_custom_call.1']
    #allocation4 [shape = 's32[1]{0}', space=sflag, size = 0x4, scoped, tag = 'scoped memory for tpu_custom_call.1']
    #allocation5 [shape = 'u8[4096]{0}', space=vmem, size = 0x1000, scoped, tag = 'output window, operand 0, single buffered']
    %10 = vsyncpa [#allocation3], 0
    %11 = vsyncpa [#allocation4], 0
    // Predicated region
    $region2: #{tpu_custom_call.1} parent=1 // pred_check
      _
    $region3: #{tpu_custom_call.1} parent=1 // pred_check_branch
      %13 = sbr.rel (0) target = $region5
    $region4: #{tpu_custom_call.1} parent=1 // pred_region
      _
    $region5: #{tpu_custom_call.1} parent=1 // pred_fallthru
      _
    // Predicated region
    $region6: #{tpu_custom_call.1} parent=1 // pred_check
      _
    $region7: #{tpu_custom_call.1} parent=1 // pred_check_branch
      %15 = sbr.rel (0) target = $region9
    $region8: #{tpu_custom_call.1} parent=1 // pred_region
      _
    $region9: #{tpu_custom_call.1} parent=1 // pred_fallthru
      _
    // Predicated region
    $region10: #{tpu_custom_call.1} parent=1 // pred_check
      _
    $region11: #{tpu_custom_call.1} parent=1 // pred_check_branch
      %17 = sbr.rel (0) target = $region13
    $region12: #{tpu_custom_call.1} parent=1 // pred_region
      %s19 = ssub.s32 1536, 1536
      %20 = vsyncadd [#allocation3], %s19
      %s21 = sshll.u32 [#allocation2], 4
      %s22 = int_to_ptr.vmem [resolvable:$true] %s21
      %27 = dma.hbm_to_vmem [thread:$0]  %s2, 1536, %s22, [#allocation3], 128, 128, 8
    $region13: #{tpu_custom_call.1} parent=1 // pred_fallthru
      _
    // Predicated region
    $region14: #{tpu_custom_call.1} parent=1 // pred_check
      _
    $region15: #{tpu_custom_call.1} parent=1 // pred_check_branch
      %29 = sbr.rel (0) target = $region17
    $region16: #{tpu_custom_call.1} parent=1 // pred_region
      _
    $region17: #{tpu_custom_call.1} parent=1 // pred_fallthru
      _
    // Predicated region
    $region18: #{tpu_custom_call.1} parent=1 // pred_check
      _
    $region19: #{tpu_custom_call.1} parent=1 // pred_check_branch
      %31 = sbr.rel (0) target = $region21
    $region20: #{tpu_custom_call.1} parent=1 // pred_region
      _
    $region21: #{tpu_custom_call.1} parent=1 // pred_fallthru
      _
    // Predicated region
    $region22: #{tpu_custom_call.1} parent=1 // pred_check
      _
    $region23: #{tpu_custom_call.1} parent=1 // pred_check_branch
      %33 = sbr.rel (0) target = $region25
    $region24: #{tpu_custom_call.1} parent=1 // pred_region
      %34 = dma.done [#allocation3], 1536
    $region25: #{tpu_custom_call.1} parent=1 // pred_fallthru
      _
    %v35 = vld [vmem:[%s0] sm:$0xff]
    %v36 = vld [vmem:[%s0 + $0x8] sm:$0xff]
    %v37 = vld [vmem:[%s0 + $0x10] sm:$0xff]
    %v38 = vld [vmem:[%s0 + $0x18] sm:$0xff]
    %v39 = vld [vmem:[%s0 + $0x20] sm:$0xff]
    %v40 = vld [vmem:[%s0 + $0x28] sm:$0xff]
    %v41 = vld [vmem:[%s0 + $0x30] sm:$0xff]
    %v42 = vld [vmem:[%s0 + $0x38] sm:$0xff]
    %v43 = vld [vmem:[%s0 + $0x40] sm:$0xff]
    %v44 = vlaneseq
    %v45 = vand.u32 %v44, 127
    %46 = vset.pattern.permute.xlu0 0
    %47 = vperm.xlu0 %46, %v35
    %v48 = vpop.permute.xlu0 %47
    %49 = vset.pattern.permute.xlu0 0
    %50 = vperm.xlu0 %49, %v36
    %v51 = vpop.permute.xlu0 %50
    %52 = vset.pattern.permute.xlu0 0
    %53 = vperm.xlu0 %52, %v37
    %v54 = vpop.permute.xlu0 %53
    %55 = vset.pattern.permute.xlu0 0
    %56 = vperm.xlu0 %55, %v38
    %v57 = vpop.permute.xlu0 %56
    %58 = vset.pattern.permute.xlu0 0
    %59 = vperm.xlu0 %58, %v39
    %v60 = vpop.permute.xlu0 %59
    %61 = vset.pattern.permute.xlu0 0
    %62 = vperm.xlu0 %61, %v40
    %v63 = vpop.permute.xlu0 %62
    %64 = vset.pattern.permute.xlu0 0
    %65 = vperm.xlu0 %64, %v41
    %v66 = vpop.permute.xlu0 %65
    %67 = vset.pattern.permute.xlu0 0
    %68 = vperm.xlu0 %67, %v42
    %v69 = vpop.permute.xlu0 %68
    %70 = vset.pattern.permute.xlu0 0
    %71 = vperm.xlu0 %70, %v43
    %v72 = vpop.permute.xlu0 %71
    %vm73 = vcmp.eq.s32.totalorder %v45, %v48
    %vm74 = vcmp.eq.s32.totalorder %v45, %v51
    %vm75 = vcmp.eq.s32.totalorder %v45, %v54
    %vm76 = vcmp.eq.s32.totalorder %v45, %v57
    %vm77 = vcmp.eq.s32.totalorder %v45, %v60
    %vm78 = vcmp.eq.s32.totalorder %v45, %v63
    %vm79 = vcmp.eq.s32.totalorder %v45, %v66
    %vm80 = vcmp.eq.s32.totalorder %v45, %v69
    %vm81 = vcmp.eq.s32.totalorder %v45, %v72
    %v82 = vsel %vm73, 1, 0
    %v83 = vsel %vm74, 1, 0
    %v84 = vsel %vm75, 1, 0
    %v85 = vsel %vm76, 1, 0
    %v86 = vsel %vm77, 1, 0
    %v87 = vsel %vm78, 1, 0
    %v88 = vsel %vm79, 1, 0
    %v89 = vsel %vm80, 1, 0
    %v90 = vsel %vm81, 1, 0
    %v91 = vcvt.s32.f32 %v82
    %v92 = vcvt.s32.f32 %v83
    %v93 = vcvt.s32.f32 %v84
    %v94 = vcvt.s32.f32 %v85
    %v95 = vcvt.s32.f32 %v86
    %v96 = vcvt.s32.f32 %v87
    %v97 = vcvt.s32.f32 %v88
    %v98 = vcvt.s32.f32 %v89
    %v99 = vcvt.s32.f32 %v90
    %v100 = vld [vmem:[%s1] sm:$0xff]
    %v101 = vld [vmem:[%s1 + $0x8] sm:$0xff]
    %v102 = vld [vmem:[%s1 + $0x10] sm:$0x3f]
    %vm103 = vcmask 179200
    %v105 = vsel %vm103, %v91, 0
    %v108 = vsel %vm103, %v92, 0
    %v111 = vsel %vm103, %v93, 0
    %v114 = vsel %vm103, %v94, 0
    %v117 = vsel %vm103, %v95, 0
    %v120 = vsel %vm103, %v96, 0
    %v123 = vsel %vm103, %v97, 0
    %v126 = vsel %vm103, %v98, 0
    %v129 = vsel %vm103, %v99, 0
    %vm131 = vcmask 1045504
    %v133 = vsel %vm131, %v102, 0
    %135 = vmatprep.subr.mxu0 0.0
    %136 = vmatpush1.msra.mxu0 %v100
    %137 = vmatprep.subr.mxu0 0.0
    %138 = vmatpush1.msra.mxu0 %v101
    %139 = vmatprep.subr.mxu0 0.0
    %140 = vmatpush1.msra.mxu0 %v133
    %141 = vmatprep.subr.mxu0 0.0
    %142 = vmatpush1.msra.mxu0 0.0
    %143 = vmatprep.subr.mxu0 0.0
    %144 = vmatpush1.msra.mxu0 0.0
    %145 = vmatprep.subr.mxu0 0.0
    %146 = vmatpush1.msra.mxu0 0.0
    %147 = vmatprep.subr.mxu0 0.0
    %148 = vmatpush1.msra.mxu0 0.0
    %149 = vmatprep.subr.mxu0 0.0
    %150 = vmatpush1.msra.mxu0 0.0
    %151 = vmatprep.subr.mxu0 0.0
    %152 = vmatpush1.msra.mxu0 0.0
    %153 = vmatprep.subr.mxu0 0.0
    %154 = vmatpush1.msra.mxu0 0.0
    %155 = vmatprep.subr.mxu0 0.0
    %156 = vmatpush1.msra.mxu0 0.0
    %157 = vmatprep.subr.mxu0 0.0
    %158 = vmatpush1.msra.mxu0 0.0
    %159 = vmatprep.subr.mxu0 0.0
    %160 = vmatpush1.msra.mxu0 0.0
    %161 = vmatprep.subr.mxu0 0.0
    %162 = vmatpush1.msra.mxu0 0.0
    %163 = vmatprep.subr.mxu0 0.0
    %164 = vmatpush1.msra.mxu0 0.0
    %165 = vmatprep.subr.mxu0 0.0
    %166 = vmatpush1.msra.mxu0 0.0
    %167 = vmatprep.subr.mxu0 0.0
    %168 = vmatpush1.msra.mxu0 0.0
    %169 = vmatprep.subr.mxu0 0.0
    %170 = vmatpush1.msra.mxu0 0.0
    %171 = vmatprep.subr.mxu0 0.0
    %172 = vmatpush1.msra.mxu0 0.0
    %173 = vmatprep.subr.mxu0 0.0
    %174 = vmatpush1.msra.mxu0 0.0
    %175 = vmatprep.subr.mxu0 0.0
    %176 = vmatpush1.msra.mxu0 0.0
    %177 = vmatprep.subr.mxu0 0.0
    %178 = vmatpush1.msra.mxu0 0.0
    %179 = vmatprep.subr.mxu0 0.0
    %180 = vmatpush1.msra.mxu0 0.0
    %181 = vmatprep.subr.mxu0 0.0
    %182 = vmatpush1.msra.mxu0 0.0
    %183 = vmatprep.subr.mxu0 0.0
    %184 = vmatpush1.msra.mxu0 0.0
    %185 = vmatprep.subr.mxu0 0.0
    %186 = vmatpush1.msra.mxu0 0.0
    %187 = vmatprep.subr.mxu0 0.0
    %188 = vmatpush1.msra.mxu0 0.0
    %189 = vmatprep.subr.mxu0 0.0
    %190 = vmatpush1.msra.mxu0 0.0
    %191 = vmatprep.subr.mxu0 0.0
    %192 = vmatpush1.msra.mxu0 0.0
    %193 = vmatprep.subr.mxu0 0.0
    %194 = vmatpush1.msra.mxu0 0.0
    %195 = vmatprep.subr.mxu0 0.0
    %196 = vmatpush1.msra.mxu0 0.0
    %197 = vmatprep.subr.mxu0 0.0
    %198 = vmatpush1.msra.mxu0 0.0
    %199 = vmatprep.mubr.f32.mxu0 0.0
    %200 = vmatmul.mubr.f32.gmra.mrb[0].mxu0 %v105
    %v201 = vpop.f32.mrb[0].mxu0
    %v202 = vadd.f32 0.0, %v201
    %v203 = vpop.f32.mrb[0].mxu0
    %204 = vmatprep.mubr.f32.mxu0 0.0
    %205 = vmatmul.mubr.f32.gmra.mrb[0].mxu0 %v108
    %v206 = vpop.f32.mrb[0].mxu0
    %v207 = vadd.f32 0.0, %v206
    %v208 = vpop.f32.mrb[0].mxu0
    %209 = vmatprep.mubr.f32.mxu0 0.0
    %210 = vmatmul.mubr.f32.gmra.mrb[0].mxu0 %v111
    %v211 = vpop.f32.mrb[0].mxu0
    %v212 = vadd.f32 0.0, %v211
    %v213 = vpop.f32.mrb[0].mxu0
    %214 = vmatprep.mubr.f32.mxu0 0.0
    %215 = vmatmul.mubr.f32.gmra.mrb[0].mxu0 %v114
    %v216 = vpop.f32.mrb[0].mxu0
    %v217 = vadd.f32 0.0, %v216
    %v218 = vpop.f32.mrb[0].mxu0
    %219 = vmatprep.mubr.f32.mxu0 0.0
    %220 = vmatmul.mubr.f32.gmra.mrb[0].mxu0 %v117
    %v221 = vpop.f32.mrb[0].mxu0
    %v222 = vadd.f32 0.0, %v221
    %v223 = vpop.f32.mrb[0].mxu0
    %224 = vmatprep.mubr.f32.mxu0 0.0
    %225 = vmatmul.mubr.f32.gmra.mrb[0].mxu0 %v120
    %v226 = vpop.f32.mrb[0].mxu0
    %v227 = vadd.f32 0.0, %v226
    %v228 = vpop.f32.mrb[0].mxu0
    %229 = vmatprep.mubr.f32.mxu0 0.0
    %230 = vmatmul.mubr.f32.gmra.mrb[0].mxu0 %v123
    %v231 = vpop.f32.mrb[0].mxu0
    %v232 = vadd.f32 0.0, %v231
    %v233 = vpop.f32.mrb[0].mxu0
    %234 = vmatprep.mubr.f32.mxu0 0.0
    %235 = vmatmul.mubr.f32.gmra.mrb[0].mxu0 %v126
    %v236 = vpop.f32.mrb[0].mxu0
    %v237 = vadd.f32 0.0, %v236
    %v238 = vpop.f32.mrb[0].mxu0
    %239 = vmatprep.mubr.f32.mxu0 0.0
    %240 = vmatmul.mubr.f32.gmra.mrb[0].mxu0 %v129
    %v241 = vpop.f32.mrb[0].mxu0
    %v242 = vadd.f32 0.0, %v241
    %v243 = vpop.f32.mrb[0].mxu0
    %244 = vdwg.mxu0
    %v245 = vld [vmem:[#allocation2] sm:$0xff]
    %v246 = vld [vmem:[#allocation2 + $0x8] sm:$0xff]
    %v247 = vld [vmem:[#allocation2 + $0x10] sm:$0xff]
    %v248 = vld [vmem:[#allocation2 + $0x18] sm:$0xff]
    %s249 = scalar_lea.vmem [#allocation2], 32
    %v250 = vld [vmem:[%s249] sm:$0xff]
    %v251 = vld [vmem:[%s249 + $0x8] sm:$0xff]
    %v252 = vld [vmem:[%s249 + $0x10] sm:$0xff]
    %v253 = vld [vmem:[%s249 + $0x18] sm:$0xff]
    %vm263 = vcmask 1046528
    %v264 = vrot.slane %v202, 1
    %v265 = vrot.slane %v207, 1
    %v266 = vsel %vm263, %v264, %v265
    %v267 = vrot.slane %v212, 1
    %v268 = vsel %vm263, %v265, %v267
    %v269 = vrot.slane %v217, 1
    %v270 = vsel %vm263, %v267, %v269
    %v271 = vrot.slane %v222, 1
    %v272 = vsel %vm263, %v269, %v271
    %v273 = vrot.slane %v227, 1
    %v274 = vsel %vm263, %v271, %v273
    %v275 = vrot.slane %v232, 1
    %v276 = vsel %vm263, %v273, %v275
    %v277 = vrot.slane %v237, 1
    %v278 = vsel %vm263, %v275, %v277
    %v279 = vrot.slane %v242, 1
    %v280 = vsel %vm263, %v277, %v279
    %vm281 = vcmask 261120
    %v282 = vsel %vm281, %v266, 0
    %v284 = vsel %vm281, %v268, 0
    %v286 = vsel %vm281, %v270, 0
    %v288 = vsel %vm281, %v272, 0
    %v290 = vsel %vm281, %v274, 0
    %v292 = vsel %vm281, %v276, 0
    %v294 = vsel %vm281, %v278, 0
    %v296 = vsel %vm281, %v280, 0
    %v298 = vsel %vm281, %v279, 0
    %300 = vmatprep.subr.mxu0 0.0
    %301 = vmatpush1.msra.mxu0 %v250
    %302 = vmatprep.subr.mxu0 0.0
    %303 = vmatpush1.msra.mxu0 %v251
    %304 = vmatprep.subr.mxu0 0.0
    %305 = vmatpush1.msra.mxu0 %v252
    %306 = vmatprep.subr.mxu0 0.0
    %307 = vmatpush1.msra.mxu0 %v253
    %308 = vmatprep.subr.mxu0 0.0
    %309 = vmatpush1.msra.mxu0 0.0
    %310 = vmatprep.subr.mxu0 0.0
    %311 = vmatpush1.msra.mxu0 0.0
    %312 = vmatprep.subr.mxu0 0.0
    %313 = vmatpush1.msra.mxu0 0.0
    %314 = vmatprep.subr.mxu0 0.0
    %315 = vmatpush1.msra.mxu0 0.0
    %316 = vmatprep.subr.mxu0 0.0
    %317 = vmatpush1.msra.mxu0 0.0
    %318 = vmatprep.subr.mxu0 0.0
    %319 = vmatpush1.msra.mxu0 0.0
    %320 = vmatprep.subr.mxu0 0.0
    %321 = vmatpush1.msra.mxu0 0.0
    %322 = vmatprep.subr.mxu0 0.0
    %323 = vmatpush1.msra.mxu0 0.0
    %324 = vmatprep.subr.mxu0 0.0
    %325 = vmatpush1.msra.mxu0 0.0
    %326 = vmatprep.subr.mxu0 0.0
    %327 = vmatpush1.msra.mxu0 0.0
    %328 = vmatprep.subr.mxu0 0.0
    %329 = vmatpush1.msra.mxu0 0.0
    %330 = vmatprep.subr.mxu0 0.0
    %331 = vmatpush1.msra.mxu0 0.0
    %332 = vmatprep.subr.mxu0 0.0
    %333 = vmatpush1.msra.mxu0 0.0
    %334 = vmatprep.subr.mxu0 0.0
    %335 = vmatpush1.msra.mxu0 0.0
    %336 = vmatprep.subr.mxu0 0.0
    %337 = vmatpush1.msra.mxu0 0.0
    %338 = vmatprep.subr.mxu0 0.0
    %339 = vmatpush1.msra.mxu0 0.0
    %340 = vmatprep.subr.mxu0 0.0
    %341 = vmatpush1.msra.mxu0 0.0
    %342 = vmatprep.subr.mxu0 0.0
    %343 = vmatpush1.msra.mxu0 0.0
    %344 = vmatprep.subr.mxu0 0.0
    %345 = vmatpush1.msra.mxu0 0.0
    %346 = vmatprep.subr.mxu0 0.0
    %347 = vmatpush1.msra.mxu0 0.0
    %348 = vmatprep.subr.mxu0 0.0
    %349 = vmatpush1.msra.mxu0 0.0
    %350 = vmatprep.subr.mxu0 0.0
    %351 = vmatpush1.msra.mxu0 0.0
    %352 = vmatprep.subr.mxu0 0.0
    %353 = vmatpush1.msra.mxu0 0.0
    %354 = vmatprep.subr.mxu0 0.0
    %355 = vmatpush1.msra.mxu0 0.0
    %356 = vmatprep.subr.mxu0 0.0
    %357 = vmatpush1.msra.mxu0 0.0
    %358 = vmatprep.subr.mxu0 0.0
    %359 = vmatpush1.msra.mxu0 0.0
    %360 = vmatprep.subr.mxu0 0.0
    %361 = vmatpush1.msra.mxu0 0.0
    %362 = vmatprep.subr.mxu0 0.0
    %363 = vmatpush1.msra.mxu0 0.0
    %364 = vmatprep.mubr.f32.mxu0 0.0
    %365 = vmatmul.mubr.f32.gmra.mrb[0].mxu0 %v282
    %v366 = vpop.f32.mrb[0].mxu0
    %v367 = vadd.f32 0.0, %v366
    %v368 = vpop.f32.mrb[0].mxu0
    %369 = vmatprep.mubr.f32.mxu0 0.0
    %370 = vmatmul.mubr.f32.gmra.mrb[0].mxu0 %v284
    %v371 = vpop.f32.mrb[0].mxu0
    %v372 = vadd.f32 0.0, %v371
    %v373 = vpop.f32.mrb[0].mxu0
    %374 = vmatprep.mubr.f32.mxu0 0.0
    %375 = vmatmul.mubr.f32.gmra.mrb[0].mxu0 %v286
    %v376 = vpop.f32.mrb[0].mxu0
    %v377 = vadd.f32 0.0, %v376
    %v378 = vpop.f32.mrb[0].mxu0
    %379 = vmatprep.mubr.f32.mxu0 0.0
    %380 = vmatmul.mubr.f32.gmra.mrb[0].mxu0 %v288
    %v381 = vpop.f32.mrb[0].mxu0
    %v382 = vadd.f32 0.0, %v381
    %v383 = vpop.f32.mrb[0].mxu0
    %384 = vmatprep.mubr.f32.mxu0 0.0
    %385 = vmatmul.mubr.f32.gmra.mrb[0].mxu0 %v290
    %v386 = vpop.f32.mrb[0].mxu0
    %v387 = vadd.f32 0.0, %v386
    %v388 = vpop.f32.mrb[0].mxu0
    %389 = vmatprep.mubr.f32.mxu0 0.0
    %390 = vmatmul.mubr.f32.gmra.mrb[0].mxu0 %v292
    %v391 = vpop.f32.mrb[0].mxu0
    %v392 = vadd.f32 0.0, %v391
    %v393 = vpop.f32.mrb[0].mxu0
    %394 = vmatprep.mubr.f32.mxu0 0.0
    %395 = vmatmul.mubr.f32.gmra.mrb[0].mxu0 %v294
    %v396 = vpop.f32.mrb[0].mxu0
    %v397 = vadd.f32 0.0, %v396
    %v398 = vpop.f32.mrb[0].mxu0
    %399 = vmatprep.mubr.f32.mxu0 0.0
    %400 = vmatmul.mubr.f32.gmra.mrb[0].mxu0 %v296
    %v401 = vpop.f32.mrb[0].mxu0
    %v402 = vadd.f32 0.0, %v401
    %v403 = vpop.f32.mrb[0].mxu0
    %404 = vmatprep.mubr.f32.mxu0 0.0
    %405 = vmatmul.mubr.f32.gmra.mrb[0].mxu0 %v298
    %v406 = vpop.f32.mrb[0].mxu0
    %v407 = vadd.f32 0.0, %v406
    %v408 = vpop.f32.mrb[0].mxu0
    %409 = vdwg.mxu0
    %v410 = vsel %vm281, %v202, 0
    %v412 = vsel %vm281, %v207, 0
    %v414 = vsel %vm281, %v212, 0
    %v416 = vsel %vm281, %v217, 0
    %v418 = vsel %vm281, %v222, 0
    %v420 = vsel %vm281, %v227, 0
    %v422 = vsel %vm281, %v232, 0
    %v424 = vsel %vm281, %v237, 0
    %v426 = vsel %vm281, %v242, 0
    %428 = vmatprep.subr.mxu0 0.0
    %429 = vmatpush1.msra.mxu0 %v245
    %430 = vmatprep.subr.mxu0 0.0
    %431 = vmatpush1.msra.mxu0 %v246
    %432 = vmatprep.subr.mxu0 0.0
    %433 = vmatpush1.msra.mxu0 %v247
    %434 = vmatprep.subr.mxu0 0.0
    %435 = vmatpush1.msra.mxu0 %v248
    %436 = vmatprep.subr.mxu0 0.0
    %437 = vmatpush1.msra.mxu0 0.0
    %438 = vmatprep.subr.mxu0 0.0
    %439 = vmatpush1.msra.mxu0 0.0
    %440 = vmatprep.subr.mxu0 0.0
    %441 = vmatpush1.msra.mxu0 0.0
    %442 = vmatprep.subr.mxu0 0.0
    %443 = vmatpush1.msra.mxu0 0.0
    %444 = vmatprep.subr.mxu0 0.0
    %445 = vmatpush1.msra.mxu0 0.0
    %446 = vmatprep.subr.mxu0 0.0
    %447 = vmatpush1.msra.mxu0 0.0
    %448 = vmatprep.subr.mxu0 0.0
    %449 = vmatpush1.msra.mxu0 0.0
    %450 = vmatprep.subr.mxu0 0.0
    %451 = vmatpush1.msra.mxu0 0.0
    %452 = vmatprep.subr.mxu0 0.0
    %453 = vmatpush1.msra.mxu0 0.0
    %454 = vmatprep.subr.mxu0 0.0
    %455 = vmatpush1.msra.mxu0 0.0
    %456 = vmatprep.subr.mxu0 0.0
    %457 = vmatpush1.msra.mxu0 0.0
    %458 = vmatprep.subr.mxu0 0.0
    %459 = vmatpush1.msra.mxu0 0.0
    %460 = vmatprep.subr.mxu0 0.0
    %461 = vmatpush1.msra.mxu0 0.0
    %462 = vmatprep.subr.mxu0 0.0
    %463 = vmatpush1.msra.mxu0 0.0
    %464 = vmatprep.subr.mxu0 0.0
    %465 = vmatpush1.msra.mxu0 0.0
    %466 = vmatprep.subr.mxu0 0.0
    %467 = vmatpush1.msra.mxu0 0.0
    %468 = vmatprep.subr.mxu0 0.0
    %469 = vmatpush1.msra.mxu0 0.0
    %470 = vmatprep.subr.mxu0 0.0
    %471 = vmatpush1.msra.mxu0 0.0
    %472 = vmatprep.subr.mxu0 0.0
    %473 = vmatpush1.msra.mxu0 0.0
    %474 = vmatprep.subr.mxu0 0.0
    %475 = vmatpush1.msra.mxu0 0.0
    %476 = vmatprep.subr.mxu0 0.0
    %477 = vmatpush1.msra.mxu0 0.0
    %478 = vmatprep.subr.mxu0 0.0
    %479 = vmatpush1.msra.mxu0 0.0
    %480 = vmatprep.subr.mxu0 0.0
    %481 = vmatpush1.msra.mxu0 0.0
    %482 = vmatprep.subr.mxu0 0.0
    %483 = vmatpush1.msra.mxu0 0.0
    %484 = vmatprep.subr.mxu0 0.0
    %485 = vmatpush1.msra.mxu0 0.0
    %486 = vmatprep.subr.mxu0 0.0
    %487 = vmatpush1.msra.mxu0 0.0
    %488 = vmatprep.subr.mxu0 0.0
    %489 = vmatpush1.msra.mxu0 0.0
    %490 = vmatprep.subr.mxu0 0.0
    %491 = vmatpush1.msra.mxu0 0.0
    %492 = vmatprep.mubr.f32.mxu0 0.0
    %493 = vmatmul.mubr.f32.gmra.mrb[0].mxu0 %v410
    %v494 = vpop.f32.mrb[0].mxu0
    %v495 = vadd.f32 %v367, %v494
    %v496 = vpop.f32.mrb[0].mxu0
    %497 = vmatprep.mubr.f32.mxu0 0.0
    %498 = vmatmul.mubr.f32.gmra.mrb[0].mxu0 %v412
    %v499 = vpop.f32.mrb[0].mxu0
    %v500 = vadd.f32 %v372, %v499
    %v501 = vpop.f32.mrb[0].mxu0
    %502 = vmatprep.mubr.f32.mxu0 0.0
    %503 = vmatmul.mubr.f32.gmra.mrb[0].mxu0 %v414
    %v504 = vpop.f32.mrb[0].mxu0
    %v505 = vadd.f32 %v377, %v504
    %v506 = vpop.f32.mrb[0].mxu0
    %507 = vmatprep.mubr.f32.mxu0 0.0
    %508 = vmatmul.mubr.f32.gmra.mrb[0].mxu0 %v416
    %v509 = vpop.f32.mrb[0].mxu0
    %v510 = vadd.f32 %v382, %v509
    %v511 = vpop.f32.mrb[0].mxu0
    %512 = vmatprep.mubr.f32.mxu0 0.0
    %513 = vmatmul.mubr.f32.gmra.mrb[0].mxu0 %v418
    %v514 = vpop.f32.mrb[0].mxu0
    %v515 = vadd.f32 %v387, %v514
    %v516 = vpop.f32.mrb[0].mxu0
    %517 = vmatprep.mubr.f32.mxu0 0.0
    %518 = vmatmul.mubr.f32.gmra.mrb[0].mxu0 %v420
    %v519 = vpop.f32.mrb[0].mxu0
    %v520 = vadd.f32 %v392, %v519
    %v521 = vpop.f32.mrb[0].mxu0
    %522 = vmatprep.mubr.f32.mxu0 0.0
    %523 = vmatmul.mubr.f32.gmra.mrb[0].mxu0 %v422
    %v524 = vpop.f32.mrb[0].mxu0
    %v525 = vadd.f32 %v397, %v524
    %v526 = vpop.f32.mrb[0].mxu0
    %527 = vmatprep.mubr.f32.mxu0 0.0
    %528 = vmatmul.mubr.f32.gmra.mrb[0].mxu0 %v424
    %v529 = vpop.f32.mrb[0].mxu0
    %v530 = vadd.f32 %v402, %v529
    %v531 = vpop.f32.mrb[0].mxu0
    %532 = vmatprep.mubr.f32.mxu0 0.0
    %533 = vmatmul.mubr.f32.gmra.mrb[0].mxu0 %v426
    %v534 = vpop.f32.mrb[0].mxu0
    %v535 = vadd.f32 %v407, %v534
    %v536 = vpop.f32.mrb[0].mxu0
    %537 = vdwg.mxu0
    %s538 = scalar_lea.vmem [#allocation2], 64
    %v539 = vld [vmem:[%s538] sm:$0xff]
    %v540 = vld [vmem:[%s538 + $0x8] sm:$0xff]
    %v541 = vld [vmem:[%s538 + $0x10] sm:$0xff]
    %v542 = vld [vmem:[%s538 + $0x18] sm:$0xff]
    %v543 = vrot.slane %v202, 2
    %v544 = vrot.slane %v207, 2
    %v545 = vsel %vm131, %v543, %v544
    %v546 = vrot.slane %v212, 2
    %v547 = vsel %vm131, %v544, %v546
    %v548 = vrot.slane %v217, 2
    %v549 = vsel %vm131, %v546, %v548
    %v550 = vrot.slane %v222, 2
    %v551 = vsel %vm131, %v548, %v550
    %v552 = vrot.slane %v227, 2
    %v553 = vsel %vm131, %v550, %v552
    %v554 = vrot.slane %v232, 2
    %v555 = vsel %vm131, %v552, %v554
    %v556 = vrot.slane %v237, 2
    %v557 = vsel %vm131, %v554, %v556
    %v558 = vrot.slane %v242, 2
    %v559 = vsel %vm131, %v556, %v558
    %v560 = vsel %vm281, %v545, 0
    %v562 = vsel %vm281, %v547, 0
    %v564 = vsel %vm281, %v549, 0
    %v566 = vsel %vm281, %v551, 0
    %v568 = vsel %vm281, %v553, 0
    %v570 = vsel %vm281, %v555, 0
    %v572 = vsel %vm281, %v557, 0
    %v574 = vsel %vm281, %v559, 0
    %v576 = vsel %vm281, %v558, 0
    %578 = vmatprep.subr.mxu0 0.0
    %579 = vmatpush1.msra.mxu0 %v539
    %580 = vmatprep.subr.mxu0 0.0
    %581 = vmatpush1.msra.mxu0 %v540
    %582 = vmatprep.subr.mxu0 0.0
    %583 = vmatpush1.msra.mxu0 %v541
    %584 = vmatprep.subr.mxu0 0.0
    %585 = vmatpush1.msra.mxu0 %v542
    %586 = vmatprep.subr.mxu0 0.0
    %587 = vmatpush1.msra.mxu0 0.0
    %588 = vmatprep.subr.mxu0 0.0
    %589 = vmatpush1.msra.mxu0 0.0
    %590 = vmatprep.subr.mxu0 0.0
    %591 = vmatpush1.msra.mxu0 0.0
    %592 = vmatprep.subr.mxu0 0.0
    %593 = vmatpush1.msra.mxu0 0.0
    %594 = vmatprep.subr.mxu0 0.0
    %595 = vmatpush1.msra.mxu0 0.0
    %596 = vmatprep.subr.mxu0 0.0
    %597 = vmatpush1.msra.mxu0 0.0
    %598 = vmatprep.subr.mxu0 0.0
    %599 = vmatpush1.msra.mxu0 0.0
    %600 = vmatprep.subr.mxu0 0.0
    %601 = vmatpush1.msra.mxu0 0.0
    %602 = vmatprep.subr.mxu0 0.0
    %603 = vmatpush1.msra.mxu0 0.0
    %604 = vmatprep.subr.mxu0 0.0
    %605 = vmatpush1.msra.mxu0 0.0
    %606 = vmatprep.subr.mxu0 0.0
    %607 = vmatpush1.msra.mxu0 0.0
    %608 = vmatprep.subr.mxu0 0.0
    %609 = vmatpush1.msra.mxu0 0.0
    %610 = vmatprep.subr.mxu0 0.0
    %611 = vmatpush1.msra.mxu0 0.0
    %612 = vmatprep.subr.mxu0 0.0
    %613 = vmatpush1.msra.mxu0 0.0
    %614 = vmatprep.subr.mxu0 0.0
    %615 = vmatpush1.msra.mxu0 0.0
    %616 = vmatprep.subr.mxu0 0.0
    %617 = vmatpush1.msra.mxu0 0.0
    %618 = vmatprep.subr.mxu0 0.0
    %619 = vmatpush1.msra.mxu0 0.0
    %620 = vmatprep.subr.mxu0 0.0
    %621 = vmatpush1.msra.mxu0 0.0
    %622 = vmatprep.subr.mxu0 0.0
    %623 = vmatpush1.msra.mxu0 0.0
    %624 = vmatprep.subr.mxu0 0.0
    %625 = vmatpush1.msra.mxu0 0.0
    %626 = vmatprep.subr.mxu0 0.0
    %627 = vmatpush1.msra.mxu0 0.0
    %628 = vmatprep.subr.mxu0 0.0
    %629 = vmatpush1.msra.mxu0 0.0
    %630 = vmatprep.subr.mxu0 0.0
    %631 = vmatpush1.msra.mxu0 0.0
    %632 = vmatprep.subr.mxu0 0.0
    %633 = vmatpush1.msra.mxu0 0.0
    %634 = vmatprep.subr.mxu0 0.0
    %635 = vmatpush1.msra.mxu0 0.0
    %636 = vmatprep.subr.mxu0 0.0
    %637 = vmatpush1.msra.mxu0 0.0
    %638 = vmatprep.subr.mxu0 0.0
    %639 = vmatpush1.msra.mxu0 0.0
    %640 = vmatprep.subr.mxu0 0.0
    %641 = vmatpush1.msra.mxu0 0.0
    %642 = vmatprep.mubr.f32.mxu0 0.0
    %643 = vmatmul.mubr.f32.gmra.mrb[0].mxu0 %v560
    %v644 = vpop.f32.mrb[0].mxu0
    %v645 = vadd.f32 0.0, %v644
    %v646 = vpop.f32.mrb[0].mxu0
    %647 = vmatprep.mubr.f32.mxu0 0.0
    %648 = vmatmul.mubr.f32.gmra.mrb[0].mxu0 %v562
    %v649 = vpop.f32.mrb[0].mxu0
    %v650 = vadd.f32 0.0, %v649
    %v651 = vpop.f32.mrb[0].mxu0
    %652 = vmatprep.mubr.f32.mxu0 0.0
    %653 = vmatmul.mubr.f32.gmra.mrb[0].mxu0 %v564
    %v654 = vpop.f32.mrb[0].mxu0
    %v655 = vadd.f32 0.0, %v654
    %v656 = vpop.f32.mrb[0].mxu0
    %657 = vmatprep.mubr.f32.mxu0 0.0
    %658 = vmatmul.mubr.f32.gmra.mrb[0].mxu0 %v566
    %v659 = vpop.f32.mrb[0].mxu0
    %v660 = vadd.f32 0.0, %v659
    %v661 = vpop.f32.mrb[0].mxu0
    %662 = vmatprep.mubr.f32.mxu0 0.0
    %663 = vmatmul.mubr.f32.gmra.mrb[0].mxu0 %v568
    %v664 = vpop.f32.mrb[0].mxu0
    %v665 = vadd.f32 0.0, %v664
    %v666 = vpop.f32.mrb[0].mxu0
    %667 = vmatprep.mubr.f32.mxu0 0.0
    %668 = vmatmul.mubr.f32.gmra.mrb[0].mxu0 %v570
    %v669 = vpop.f32.mrb[0].mxu0
    %v670 = vadd.f32 0.0, %v669
    %v671 = vpop.f32.mrb[0].mxu0
    %672 = vmatprep.mubr.f32.mxu0 0.0
    %673 = vmatmul.mubr.f32.gmra.mrb[0].mxu0 %v572
    %v674 = vpop.f32.mrb[0].mxu0
    %v675 = vadd.f32 0.0, %v674
    %v676 = vpop.f32.mrb[0].mxu0
    %677 = vmatprep.mubr.f32.mxu0 0.0
    %678 = vmatmul.mubr.f32.gmra.mrb[0].mxu0 %v574
    %v679 = vpop.f32.mrb[0].mxu0
    %v680 = vadd.f32 0.0, %v679
    %v681 = vpop.f32.mrb[0].mxu0
    %682 = vmatprep.mubr.f32.mxu0 0.0
    %683 = vmatmul.mubr.f32.gmra.mrb[0].mxu0 %v576
    %v684 = vpop.f32.mrb[0].mxu0
    %v685 = vadd.f32 0.0, %v684
    %v686 = vpop.f32.mrb[0].mxu0
    %687 = vdwg.mxu0
    %v688 = vadd.f32 %v495, %v645
    %v689 = vadd.f32 %v500, %v650
    %v690 = vadd.f32 %v505, %v655
    %v691 = vadd.f32 %v510, %v660
    %v692 = vadd.f32 %v515, %v665
    %v693 = vadd.f32 %v520, %v670
    %v694 = vadd.f32 %v525, %v675
    %v695 = vadd.f32 %v530, %v680
    %v696 = vadd.f32 %v535, %v685
    %v697 = vlaneseq
    %v698 = vshrl.u32 %v697, 7
    %v699 = vld [vmem:[%s4] sm:$0x1]
    %v700 = vlaneseq
    %v701 = vshrl.u32 %v700, 7
    %v702 = vsub.s32 0, %v701
    %v703 = vrot.slane %v699, %v702
    %vm704 = vcmp.lt.s32.totalorder %v698, %v703
    %v705 = vsel %vm704, %v688, -inf
    %vm706 = vcmask 260096
    %v707 = vsel %vm706, %v705, -inf
    %v708 = vrot.slane %v707, 4
    %v709 = vmax.f32 %v707, %v708
    %v710 = vrot.slane %v709, 2
    %v711 = vmax.f32 %v709, %v710
    %v712 = vrot.slane %v711, 1
    %v713 = vmax.f32 %v711, %v712
    %v715 = vrot.slane %v689, 1
    %v717 = vsel %vm704, %v715, -inf
    %v718 = vsel %vm706, %v717, -inf
    %v719 = vrot.slane %v718, 4
    %v720 = vmax.f32 %v718, %v719
    %v721 = vrot.slane %v720, 2
    %v722 = vmax.f32 %v720, %v721
    %v723 = vrot.slane %v722, 1
    %v724 = vmax.f32 %v722, %v723
    %v727 = vrot.slane %v690, 2
    %v728 = vrot.slane %v691, 2
    %v729 = vsel %vm131, %v727, %v728
    %v731 = vsel %vm704, %v729, -inf
    %v732 = vsel %vm706, %v731, -inf
    %v733 = vrot.slane %v732, 4
    %v734 = vmax.f32 %v732, %v733
    %v735 = vrot.slane %v734, 2
    %v736 = vmax.f32 %v734, %v735
    %v737 = vrot.slane %v736, 1
    %v738 = vmax.f32 %v736, %v737
    %vm740 = vcmask 1044480
    %v741 = vrot.slane %v691, 3
    %v742 = vrot.slane %v692, 3
    %v743 = vsel %vm740, %v741, %v742
    %v745 = vsel %vm704, %v743, -inf
    %v746 = vsel %vm706, %v745, -inf
    %v747 = vrot.slane %v746, 4
    %v748 = vmax.f32 %v746, %v747
    %v749 = vrot.slane %v748, 2
    %v750 = vmax.f32 %v748, %v749
    %v751 = vrot.slane %v750, 1
    %v752 = vmax.f32 %v750, %v751
    %vm754 = vcmask 1043456
    %v755 = vrot.slane %v692, 4
    %v756 = vrot.slane %v693, 4
    %v757 = vsel %vm754, %v755, %v756
    %v759 = vsel %vm704, %v757, -inf
    %v760 = vsel %vm706, %v759, -inf
    %v761 = vrot.slane %v760, 4
    %v762 = vmax.f32 %v760, %v761
    %v763 = vrot.slane %v762, 2
    %v764 = vmax.f32 %v762, %v763
    %v765 = vrot.slane %v764, 1
    %v766 = vmax.f32 %v764, %v765
    %vm768 = vcmask 1042432
    %v769 = vrot.slane %v693, 5
    %v770 = vrot.slane %v694, 5
    %v771 = vsel %vm768, %v769, %v770
    %v773 = vsel %vm704, %v771, -inf
    %v774 = vsel %vm706, %v773, -inf
    %v775 = vrot.slane %v774, 4
    %v776 = vmax.f32 %v774, %v775
    %v777 = vrot.slane %v776, 2
    %v778 = vmax.f32 %v776, %v777
    %v779 = vrot.slane %v778, 1
    %v780 = vmax.f32 %v778, %v779
    %vm782 = vcmask 1041408
    %v783 = vrot.slane %v694, 6
    %v784 = vrot.slane %v695, 6
    %v785 = vsel %vm782, %v783, %v784
    %v787 = vsel %vm704, %v785, -inf
    %v788 = vsel %vm706, %v787, -inf
    %v789 = vrot.slane %v788, 4
    %v790 = vmax.f32 %v788, %v789
    %v791 = vrot.slane %v790, 2
    %v792 = vmax.f32 %v790, %v791
    %v793 = vrot.slane %v792, 1
    %v794 = vmax.f32 %v792, %v793
    %vm796 = vcmask 1040384
    %v797 = vrot.slane %v695, 7
    %v798 = vrot.slane %v696, 7
    %v799 = vsel %vm796, %v797, %v798
    %v801 = vsel %vm704, %v799, -inf
    %v802 = vsel %vm706, %v801, -inf
    %v803 = vrot.slane %v802, 4
    %v804 = vmax.f32 %v802, %v803
    %v805 = vrot.slane %v804, 2
    %v806 = vmax.f32 %v804, %v805
    %v807 = vrot.slane %v806, 1
    %v808 = vmax.f32 %v806, %v807
    %v809 = vsel %vm796, %v713, %v724
    %v810 = vsel %vm782, %v809, %v738
    %v811 = vsel %vm768, %v810, %v752
    %v812 = vsel %vm754, %v811, %v766
    %v813 = vsel %vm740, %v812, %v780
    %v814 = vsel %vm131, %v813, %v794
    %v815 = vsel %vm263, %v814, %v808
    %v816 = vld [vmem:[%s3] sm:$0x1]
    %v818 = vlaneseq
    %v819 = vshrl.u32 %v818, 7
    %v820 = vsub.s32 0, %v819
    %v821 = vrot.slane %v816, %v820
    %v823 = vadd.f32 %v815, %v821
    %824 = vst.msk [vmem:[#allocation5] sm:$0xff] %vm281, %v823
    // Predicated region
    $region26: #{tpu_custom_call.1} parent=1 // pred_check
      _
    $region27: #{tpu_custom_call.1} parent=1 // pred_check_branch
      %826 = sbr.rel (0) target = $region29
    $region28: #{tpu_custom_call.1} parent=1 // pred_region
      %s828 = ssub.s32 128, 128
      %829 = vsyncadd [#allocation4], %s828
      %s831 = sshll.u32 [#allocation5], 4
      %s832 = int_to_ptr.vmem [resolvable:$true] %s831
      %834 = dma.vmem_to_hbm [thread:$0]  %s832, 128, %s5, [#allocation4]
    $region29: #{tpu_custom_call.1} parent=1 // pred_fallthru
      _
    // Predicated region
    $region30: #{tpu_custom_call.1} parent=1 // pred_check
      _
    $region31: #{tpu_custom_call.1} parent=1 // pred_check_branch
      %836 = sbr.rel (0) target = $region33
    $region32: #{tpu_custom_call.1} parent=1 // pred_region
      %837 = dma.done [#allocation4], 128
    $region33: #{tpu_custom_call.1} parent=1 // pred_fallthru
      _
    %838 = vsyncpa [#allocation3], 1
    %839 = vsyncpa [#allocation4], 1

</llo_original>
